<compile_context>
chip_gen: v7x
topology: tpu7x:2x2x1
jax: 0.10.0
libtpu: 0.0.40
codegen_flags: <defaults>
</compile_context>

<pallas_src>
import jax
import jax.numpy as jnp
import numpy as np
from jax import lax
from jax.experimental import pallas as pl
from jax.experimental.pallas import tpu as pltpu

# Small, deterministic problem sizes consistent with the module's __init__.
SPEC_DIM = 8
POSTNET_DIM = 32
POSTNET_LAYERS = 2
KERNEL_SIZE = 5
B = 2
T = 16
EPS = 1e-5
PAD = KERNEL_SIZE // 2


def postnet_kernel(x_ref, w_in_ref, g_in_ref, be_in_ref,
                   w_body_ref, g_body_ref, be_body_ref,
                   w_out_ref, b_out_ref, o_ref):
    """Fused PostNet forward. All operands are VMEM-resident (shapes are tiny).

    x_ref      : (B, spec_dim, T)            PyTorch NCW input
    w_in_ref   : (spec_dim, Cd)              1x1 conv as channel matmul
    w_body_ref : (L, K*Cd, Cd)               im2col-fused body conv weights
    w_out_ref  : (Cd, spec_dim)
    g_*/be_*   : BN gamma/beta, (1, C) or (L, 1, C)
    b_out_ref  : (1, spec_dim)               only the non-BN'd bias survives
    o_ref      : (B, spec_dim, T)            PyTorch NCW output
    """
    B_, _, T_ = x_ref.shape
    L, KCd, Cd = w_body_ref.shape
    K = KCd // Cd

    def bn_tanh(y, gamma, beta):
        # training-mode BatchNorm1d (biased batch stats over batch+time),
        # folded into one scale + shift on the activation tensor.
        mean = jnp.mean(y, axis=(0, 1), keepdims=True)
        var = jnp.mean(jnp.square(y - mean), axis=(0, 1), keepdims=True)
        s = gamma * lax.rsqrt(var + EPS)          # (1, 1, Cd)
        t = beta - mean * s                        # (1, 1, Cd)
        return jnp.tanh(y * s + t)

    # NCW -> channels-last (B, T, spec) inside the kernel (XLU minor transpose).
    x = jnp.transpose(x_ref[...].astype(jnp.float32), (0, 2, 1))

    # ---- in_conv: 1x1 conv == per-timestep channel matmul (bias cancelled by BN) ----
    y = jnp.dot(x.reshape(B_ * T_, x.shape[-1]), w_in_ref[...],
                preferred_element_type=jnp.float32).reshape(B_, T_, Cd)
    y = bn_tanh(y, g_in_ref[...], be_in_ref[...])

    # ---- body: L x (K-tap "same" conv as a single im2col matmul -> BN -> tanh) ----
    wb = w_body_ref[...]            # (L, K*Cd, Cd)
    gb = g_body_ref[...]            # (L, 1, Cd)
    beb = be_body_ref[...]          # (L, 1, Cd)
    zpad = jnp.zeros((B_, PAD, Cd), jnp.float32)

    for l in range(L):
        # zero "same" padding kept as a value (no scratch store/reload).
        ypad = jnp.concatenate([zpad, y, zpad], axis=1)          # (B, T+2*PAD, Cd)
        # cross-correlation (PyTorch conv semantics): out[t] += y[t+k-PAD] @ W[k]
        # im2col: tap-k window stacked along channels -> (B, T, K*Cd)
        cols = jnp.concatenate([ypad[:, k:k + T_, :] for k in range(K)], axis=-1)
        acc = jnp.dot(cols.reshape(B_ * T_, K * Cd), wb[l],
                      preferred_element_type=jnp.float32).reshape(B_, T_, Cd)
        y = bn_tanh(acc, gb[l], beb[l])

    # ---- out: 1x1 conv, no BN / activation (bias kept) ----
    out = jnp.dot(y.reshape(B_ * T_, Cd), w_out_ref[...],
                  preferred_element_type=jnp.float32).reshape(B_, T_, SPEC_DIM)
    out = out + b_out_ref[...]
    # channels-last -> NCW for the output.
    o_ref[...] = jnp.transpose(out, (0, 2, 1)).astype(o_ref.dtype)


def postnet_forward(x_ncw, params):
    """x_ncw: (B, spec_dim, T) float32, PyTorch NCW layout. Returns same layout.

    Grid-less call: the whole problem (a few KB) is VMEM-resident; layout swaps
    happen inside the kernel so no XLA transposes surround the pallas_call.
    """
    B_, _, T_ = x_ncw.shape
    return pl.pallas_call(
        postnet_kernel,
        out_shape=jax.ShapeDtypeStruct((B_, SPEC_DIM, T_), jnp.float32),
        in_specs=[pl.BlockSpec(memory_space=pltpu.MemorySpace.VMEM)] * 9,
        out_specs=pl.BlockSpec(memory_space=pltpu.MemorySpace.VMEM),
    )(x_ncw,
      params['w_in'], params['g_in'], params['be_in'],
      params['w_body'], params['g_body'], params['be_body'],
      params['w_out'], params['b_out'])


def init_params(key):
    """Deterministic synthetic parameters. PyTorch Conv1d weights are
    (Cout, Cin, K); the kernel uses channel-matmul layouts:
      w_in  : (spec, Cd)         w_body : (L, K*Cd, Cd)        w_out : (Cd, spec)
    Pre-BN conv biases (b_in, b_body) are kept only for the reference path —
    they are mathematically cancelled by training-mode BN, so the kernel
    never loads them."""
    ks = jax.random.split(key, 8)
    w_in_t = 0.10 * jax.random.normal(ks[0], (POSTNET_DIM, SPEC_DIM, 1), jnp.float32)
    b_in = 0.10 * jax.random.normal(ks[1], (POSTNET_DIM,), jnp.float32)
    w_body_t = 0.05 * jax.random.normal(
        ks[2], (POSTNET_LAYERS, POSTNET_DIM, POSTNET_DIM, KERNEL_SIZE), jnp.float32)
    b_body = 0.10 * jax.random.normal(ks[3], (POSTNET_LAYERS, POSTNET_DIM), jnp.float32)
    w_out_t = 0.10 * jax.random.normal(ks[4], (SPEC_DIM, POSTNET_DIM, 1), jnp.float32)
    b_out = 0.10 * jax.random.normal(ks[5], (SPEC_DIM,), jnp.float32)
    gamma = 1.0 + 0.10 * jax.random.normal(ks[6], (POSTNET_LAYERS + 1, POSTNET_DIM), jnp.float32)
    beta = 0.10 * jax.random.normal(ks[7], (POSTNET_LAYERS + 1, POSTNET_DIM), jnp.float32)

    # (L, Cout, Cin, K) -> (L, K, Cin, Cout) -> (L, K*Cin, Cout) : im2col layout
    w_body_im2col = jnp.transpose(w_body_t, (0, 3, 2, 1)).reshape(
        POSTNET_LAYERS, KERNEL_SIZE * POSTNET_DIM, POSTNET_DIM)

    params = {
        'w_in': jnp.transpose(w_in_t[:, :, 0], (1, 0)),        # (spec, Cd)
        'g_in': gamma[0][None, :],                              # (1, Cd)
        'be_in': beta[0][None, :],
        'w_body': w_body_im2col,                                # (L, K*Cd, Cd)
        'g_body': gamma[1:][:, None, :],                        # (L, 1, Cd)
        'be_body': beta[1:][:, None, :],
        'w_out': jnp.transpose(w_out_t[:, :, 0], (1, 0)),       # (Cd, spec)
        'b_out': b_out[None, :],                                # (1, spec)
    }
    torch_layout = {'w_in': w_in_t, 'b_in': b_in, 'w_body': w_body_t, 'b_body': b_body,
                    'w_out': w_out_t, 'b_out': b_out, 'g': gamma, 'be': beta}
    return params, torch_layout


def ref_forward(x_ncw, tp):
    """Pure-JAX reference in PyTorch NCW layout (independent of the kernel path).
    Keeps the pre-BN conv biases to verify their cancellation in the kernel."""
    def conv1d(x, w, b, pad):
        y = lax.conv_general_dilated(x, w, window_strides=(1,), padding=[(pad, pad)],
                                     dimension_numbers=('NCH', 'OIH', 'NCH'))
        return y + b[None, :, None]

    def bn_tanh(x, gamma, beta):
        mean = x.mean(axis=(0, 2), keepdims=True)
        var = jnp.square(x - mean).mean(axis=(0, 2), keepdims=True)
        xn = (x - mean) / jnp.sqrt(var + EPS)
        return jnp.tanh(xn * gamma[None, :, None] + beta[None, :, None])

    y = bn_tanh(conv1d(x_ncw, tp['w_in'], tp['b_in'], 0), tp['g'][0], tp['be'][0])
    for l in range(POSTNET_LAYERS):
        y = bn_tanh(conv1d(y, tp['w_body'][l], tp['b_body'][l], PAD),
                    tp['g'][l + 1], tp['be'][l + 1])
    return conv1d(y, tp['w_out'], tp['b_out'], 0)


if __name__ == "__main__":
    key = jax.random.PRNGKey(0)
    kx, kp = jax.random.split(key)
    raugh_spec = jax.random.normal(kx, (B, SPEC_DIM, T), jnp.float32)  # PyTorch NCW
    params, torch_params = init_params(kp)

    out = jax.block_until_ready(postnet_forward(raugh_spec, params))
    ref = jax.block_until_ready(ref_forward(raugh_spec, torch_params))

    assert out.shape == (B, SPEC_DIM, T), out.shape
    np.testing.assert_allclose(np.asarray(out), np.asarray(ref), rtol=1e-4, atol=1e-4)
    print("KERNEL_OK")
</pallas_src>

<mosaic_0001>
module attributes {stable_mosaic.version = 11 : i64} {
  func.func @postnet_kernel(%arg0: memref<2x8x16xf32, #tpu.memory_space<vmem>>, %arg1: memref<8x32xf32, #tpu.memory_space<vmem>>, %arg2: memref<1x32xf32, #tpu.memory_space<vmem>>, %arg3: memref<1x32xf32, #tpu.memory_space<vmem>>, %arg4: memref<2x160x32xf32, #tpu.memory_space<vmem>>, %arg5: memref<2x1x32xf32, #tpu.memory_space<vmem>>, %arg6: memref<2x1x32xf32, #tpu.memory_space<vmem>>, %arg7: memref<32x8xf32, #tpu.memory_space<vmem>>, %arg8: memref<1x8xf32, #tpu.memory_space<vmem>>, %arg9: memref<2x8x16xf32, #tpu.memory_space<vmem>>) attributes {dimension_semantics = [], scalar_prefetch = 0 : i64, scratch_operands = 0 : i64, tpu.core_type = #tpu.core_type<tc>} {
    %c0 = arith.constant 0 : index
    %c0_0 = arith.constant 0 : index
    %c0_1 = arith.constant 0 : index
    %0 = vector.load %arg0[%c0, %c0_0, %c0_1] : memref<2x8x16xf32, #tpu.memory_space<vmem>>, vector<2x8x16xf32>
    %1 = tpu.transpose %0, [0, 2, 1] : vector<2x8x16xf32> -> vector<2x16x8xf32>
    %2 = vector.shape_cast %1 : vector<2x16x8xf32> to vector<32x8xf32>
    %c0_2 = arith.constant 0 : index
    %c0_3 = arith.constant 0 : index
    %3 = vector.load %arg1[%c0_2, %c0_3] : memref<8x32xf32, #tpu.memory_space<vmem>>, vector<8x32xf32>
    %cst = arith.constant dense<0.000000e+00> : vector<32x32xf32>
    %4 = tpu.matmul %2, %3, %cst {dimension_numbers = #tpu.dot_dimension_numbers<[1], [0], [0], [1], [0, 0, 1, 1], [], []>} : vector<32x8xf32>, vector<8x32xf32>, vector<32x32xf32> -> vector<32x32xf32>
    %5 = vector.shape_cast %4 : vector<32x32xf32> to vector<2x16x32xf32>
    %c0_4 = arith.constant 0 : index
    %c0_5 = arith.constant 0 : index
    %6 = vector.load %arg2[%c0_4, %c0_5] : memref<1x32xf32, #tpu.memory_space<vmem>>, vector<1x32xf32>
    %c0_6 = arith.constant 0 : index
    %c0_7 = arith.constant 0 : index
    %7 = vector.load %arg3[%c0_6, %c0_7] : memref<1x32xf32, #tpu.memory_space<vmem>>, vector<1x32xf32>
    %cst_8 = arith.constant dense<0.000000e+00> : vector<32xf32>
    %8 = vector.multi_reduction <add>, %5, %cst_8 [0, 1] : vector<2x16x32xf32> to vector<32xf32>
    %9 = vector.shape_cast %8 : vector<32xf32> to vector<1x1x32xf32>
    %cst_9 = arith.constant 3.200000e+01 : f32
    %10 = vector.broadcast %cst_9 : f32 to vector<1x1x32xf32>
    %11 = arith.divf %9, %10 : vector<1x1x32xf32>
    %12 = vector.broadcast %11 : vector<1x1x32xf32> to vector<2x16x32xf32>
    %13 = arith.subf %5, %12 : vector<2x16x32xf32>
    %14 = arith.mulf %13, %13 : vector<2x16x32xf32>
    %cst_10 = arith.constant dense<0.000000e+00> : vector<32xf32>
    %15 = vector.multi_reduction <add>, %14, %cst_10 [0, 1] : vector<2x16x32xf32> to vector<32xf32>
    %16 = vector.shape_cast %15 : vector<32xf32> to vector<1x1x32xf32>
    %cst_11 = arith.constant 3.200000e+01 : f32
    %17 = vector.broadcast %cst_11 : f32 to vector<1x1x32xf32>
    %18 = arith.divf %16, %17 : vector<1x1x32xf32>
    %cst_12 = arith.constant 9.99999974E-6 : f32
    %19 = vector.broadcast %cst_12 : f32 to vector<1x1x32xf32>
    %20 = arith.addf %18, %19 : vector<1x1x32xf32>
    %21 = math.rsqrt %20 : vector<1x1x32xf32>
    %22 = vector.shape_cast %6 : vector<1x32xf32> to vector<1x1x32xf32>
    %23 = arith.mulf %22, %21 : vector<1x1x32xf32>
    %24 = arith.mulf %11, %23 : vector<1x1x32xf32>
    %25 = vector.shape_cast %7 : vector<1x32xf32> to vector<1x1x32xf32>
    %26 = arith.subf %25, %24 : vector<1x1x32xf32>
    %27 = vector.broadcast %23 : vector<1x1x32xf32> to vector<2x16x32xf32>
    %28 = arith.mulf %5, %27 : vector<2x16x32xf32>
    %29 = vector.broadcast %26 : vector<1x1x32xf32> to vector<2x16x32xf32>
    %30 = arith.addf %28, %29 : vector<2x16x32xf32>
    %31 = math.tanh %30 : vector<2x16x32xf32>
    %c0_13 = arith.constant 0 : index
    %c0_14 = arith.constant 0 : index
    %c0_15 = arith.constant 0 : index
    %32 = vector.load %arg4[%c0_13, %c0_14, %c0_15] : memref<2x160x32xf32, #tpu.memory_space<vmem>>, vector<2x160x32xf32>
    %c0_16 = arith.constant 0 : index
    %c0_17 = arith.constant 0 : index
    %c0_18 = arith.constant 0 : index
    %33 = vector.load %arg5[%c0_16, %c0_17, %c0_18] : memref<2x1x32xf32, #tpu.memory_space<vmem>>, vector<2x1x32xf32>
    %c0_19 = arith.constant 0 : index
    %c0_20 = arith.constant 0 : index
    %c0_21 = arith.constant 0 : index
    %34 = vector.load %arg6[%c0_19, %c0_20, %c0_21] : memref<2x1x32xf32, #tpu.memory_space<vmem>>, vector<2x1x32xf32>
    %cst_22 = arith.constant 0.000000e+00 : f32
    %35 = vector.broadcast %cst_22 : f32 to vector<2x2x32xf32>
    %36 = tpu.concatenate %35, %31, %35 in 1 : vector<2x2x32xf32>, vector<2x16x32xf32>, vector<2x2x32xf32> -> vector<2x20x32xf32>
    %37 = vector.extract_strided_slice %36 {offsets = [0, 0, 0], sizes = [2, 16, 32], strides = [1, 1, 1]} : vector<2x20x32xf32> to vector<2x16x32xf32>
    %38 = vector.extract_strided_slice %36 {offsets = [0, 1, 0], sizes = [2, 16, 32], strides = [1, 1, 1]} : vector<2x20x32xf32> to vector<2x16x32xf32>
    %39 = vector.extract_strided_slice %36 {offsets = [0, 2, 0], sizes = [2, 16, 32], strides = [1, 1, 1]} : vector<2x20x32xf32> to vector<2x16x32xf32>
    %40 = vector.extract_strided_slice %36 {offsets = [0, 3, 0], sizes = [2, 16, 32], strides = [1, 1, 1]} : vector<2x20x32xf32> to vector<2x16x32xf32>
    %41 = vector.extract_strided_slice %36 {offsets = [0, 4, 0], sizes = [2, 16, 32], strides = [1, 1, 1]} : vector<2x20x32xf32> to vector<2x16x32xf32>
    %42 = tpu.concatenate %37, %38, %39, %40, %41 in 2 : vector<2x16x32xf32>, vector<2x16x32xf32>, vector<2x16x32xf32>, vector<2x16x32xf32>, vector<2x16x32xf32> -> vector<2x16x160xf32>
    %43 = vector.shape_cast %42 : vector<2x16x160xf32> to vector<32x160xf32>
    %44 = vector.extract_strided_slice %32 {offsets = [0, 0, 0], sizes = [1, 160, 32], strides = [1, 1, 1]} : vector<2x160x32xf32> to vector<1x160x32xf32>
    %45 = vector.shape_cast %44 : vector<1x160x32xf32> to vector<160x32xf32>
    %cst_23 = arith.constant dense<0.000000e+00> : vector<32x32xf32>
    %46 = tpu.matmul %43, %45, %cst_23 {dimension_numbers = #tpu.dot_dimension_numbers<[1], [0], [0], [1], [0, 0, 1, 1], [], []>} : vector<32x160xf32>, vector<160x32xf32>, vector<32x32xf32> -> vector<32x32xf32>
    %47 = vector.shape_cast %46 : vector<32x32xf32> to vector<2x16x32xf32>
    %48 = vector.extract_strided_slice %33 {offsets = [0, 0, 0], sizes = [1, 1, 32], strides = [1, 1, 1]} : vector<2x1x32xf32> to vector<1x1x32xf32>
    %49 = vector.shape_cast %48 : vector<1x1x32xf32> to vector<1x32xf32>
    %50 = vector.extract_strided_slice %34 {offsets = [0, 0, 0], sizes = [1, 1, 32], strides = [1, 1, 1]} : vector<2x1x32xf32> to vector<1x1x32xf32>
    %51 = vector.shape_cast %50 : vector<1x1x32xf32> to vector<1x32xf32>
    %cst_24 = arith.constant dense<0.000000e+00> : vector<32xf32>
    %52 = vector.multi_reduction <add>, %47, %cst_24 [0, 1] : vector<2x16x32xf32> to vector<32xf32>
    %53 = vector.shape_cast %52 : vector<32xf32> to vector<1x1x32xf32>
    %cst_25 = arith.constant 3.200000e+01 : f32
    %54 = vector.broadcast %cst_25 : f32 to vector<1x1x32xf32>
    %55 = arith.divf %53, %54 : vector<1x1x32xf32>
    %56 = vector.broadcast %55 : vector<1x1x32xf32> to vector<2x16x32xf32>
    %57 = arith.subf %47, %56 : vector<2x16x32xf32>
    %58 = arith.mulf %57, %57 : vector<2x16x32xf32>
    %cst_26 = arith.constant dense<0.000000e+00> : vector<32xf32>
    %59 = vector.multi_reduction <add>, %58, %cst_26 [0, 1] : vector<2x16x32xf32> to vector<32xf32>
    %60 = vector.shape_cast %59 : vector<32xf32> to vector<1x1x32xf32>
    %cst_27 = arith.constant 3.200000e+01 : f32
    %61 = vector.broadcast %cst_27 : f32 to vector<1x1x32xf32>
    %62 = arith.divf %60, %61 : vector<1x1x32xf32>
    %cst_28 = arith.constant 9.99999974E-6 : f32
    %63 = vector.broadcast %cst_28 : f32 to vector<1x1x32xf32>
    %64 = arith.addf %62, %63 : vector<1x1x32xf32>
    %65 = math.rsqrt %64 : vector<1x1x32xf32>
    %66 = vector.shape_cast %49 : vector<1x32xf32> to vector<1x1x32xf32>
    %67 = arith.mulf %66, %65 : vector<1x1x32xf32>
    %68 = arith.mulf %55, %67 : vector<1x1x32xf32>
    %69 = vector.shape_cast %51 : vector<1x32xf32> to vector<1x1x32xf32>
    %70 = arith.subf %69, %68 : vector<1x1x32xf32>
    %71 = vector.broadcast %67 : vector<1x1x32xf32> to vector<2x16x32xf32>
    %72 = arith.mulf %47, %71 : vector<2x16x32xf32>
    %73 = vector.broadcast %70 : vector<1x1x32xf32> to vector<2x16x32xf32>
    %74 = arith.addf %72, %73 : vector<2x16x32xf32>
    %75 = math.tanh %74 : vector<2x16x32xf32>
    %76 = tpu.concatenate %35, %75, %35 in 1 : vector<2x2x32xf32>, vector<2x16x32xf32>, vector<2x2x32xf32> -> vector<2x20x32xf32>
    %77 = vector.extract_strided_slice %76 {offsets = [0, 0, 0], sizes = [2, 16, 32], strides = [1, 1, 1]} : vector<2x20x32xf32> to vector<2x16x32xf32>
    %78 = vector.extract_strided_slice %76 {offsets = [0, 1, 0], sizes = [2, 16, 32], strides = [1, 1, 1]} : vector<2x20x32xf32> to vector<2x16x32xf32>
    %79 = vector.extract_strided_slice %76 {offsets = [0, 2, 0], sizes = [2, 16, 32], strides = [1, 1, 1]} : vector<2x20x32xf32> to vector<2x16x32xf32>
    %80 = vector.extract_strided_slice %76 {offsets = [0, 3, 0], sizes = [2, 16, 32], strides = [1, 1, 1]} : vector<2x20x32xf32> to vector<2x16x32xf32>
    %81 = vector.extract_strided_slice %76 {offsets = [0, 4, 0], sizes = [2, 16, 32], strides = [1, 1, 1]} : vector<2x20x32xf32> to vector<2x16x32xf32>
    %82 = tpu.concatenate %77, %78, %79, %80, %81 in 2 : vector<2x16x32xf32>, vector<2x16x32xf32>, vector<2x16x32xf32>, vector<2x16x32xf32>, vector<2x16x32xf32> -> vector<2x16x160xf32>
    %83 = vector.shape_cast %82 : vector<2x16x160xf32> to vector<32x160xf32>
    %84 = vector.extract_strided_slice %32 {offsets = [1, 0, 0], sizes = [1, 160, 32], strides = [1, 1, 1]} : vector<2x160x32xf32> to vector<1x160x32xf32>
    %85 = vector.shape_cast %84 : vector<1x160x32xf32> to vector<160x32xf32>
    %cst_29 = arith.constant dense<0.000000e+00> : vector<32x32xf32>
    %86 = tpu.matmul %83, %85, %cst_29 {dimension_numbers = #tpu.dot_dimension_numbers<[1], [0], [0], [1], [0, 0, 1, 1], [], []>} : vector<32x160xf32>, vector<160x32xf32>, vector<32x32xf32> -> vector<32x32xf32>
    %87 = vector.shape_cast %86 : vector<32x32xf32> to vector<2x16x32xf32>
    %88 = vector.extract_strided_slice %33 {offsets = [1, 0, 0], sizes = [1, 1, 32], strides = [1, 1, 1]} : vector<2x1x32xf32> to vector<1x1x32xf32>
    %89 = vector.shape_cast %88 : vector<1x1x32xf32> to vector<1x32xf32>
    %90 = vector.extract_strided_slice %34 {offsets = [1, 0, 0], sizes = [1, 1, 32], strides = [1, 1, 1]} : vector<2x1x32xf32> to vector<1x1x32xf32>
    %91 = vector.shape_cast %90 : vector<1x1x32xf32> to vector<1x32xf32>
    %cst_30 = arith.constant dense<0.000000e+00> : vector<32xf32>
    %92 = vector.multi_reduction <add>, %87, %cst_30 [0, 1] : vector<2x16x32xf32> to vector<32xf32>
    %93 = vector.shape_cast %92 : vector<32xf32> to vector<1x1x32xf32>
    %cst_31 = arith.constant 3.200000e+01 : f32
    %94 = vector.broadcast %cst_31 : f32 to vector<1x1x32xf32>
    %95 = arith.divf %93, %94 : vector<1x1x32xf32>
    %96 = vector.broadcast %95 : vector<1x1x32xf32> to vector<2x16x32xf32>
    %97 = arith.subf %87, %96 : vector<2x16x32xf32>
    %98 = arith.mulf %97, %97 : vector<2x16x32xf32>
    %cst_32 = arith.constant dense<0.000000e+00> : vector<32xf32>
    %99 = vector.multi_reduction <add>, %98, %cst_32 [0, 1] : vector<2x16x32xf32> to vector<32xf32>
    %100 = vector.shape_cast %99 : vector<32xf32> to vector<1x1x32xf32>
    %cst_33 = arith.constant 3.200000e+01 : f32
    %101 = vector.broadcast %cst_33 : f32 to vector<1x1x32xf32>
    %102 = arith.divf %100, %101 : vector<1x1x32xf32>
    %cst_34 = arith.constant 9.99999974E-6 : f32
    %103 = vector.broadcast %cst_34 : f32 to vector<1x1x32xf32>
    %104 = arith.addf %102, %103 : vector<1x1x32xf32>
    %105 = math.rsqrt %104 : vector<1x1x32xf32>
    %106 = vector.shape_cast %89 : vector<1x32xf32> to vector<1x1x32xf32>
    %107 = arith.mulf %106, %105 : vector<1x1x32xf32>
    %108 = arith.mulf %95, %107 : vector<1x1x32xf32>
    %109 = vector.shape_cast %91 : vector<1x32xf32> to vector<1x1x32xf32>
    %110 = arith.subf %109, %108 : vector<1x1x32xf32>
    %111 = vector.broadcast %107 : vector<1x1x32xf32> to vector<2x16x32xf32>
    %112 = arith.mulf %87, %111 : vector<2x16x32xf32>
    %113 = vector.broadcast %110 : vector<1x1x32xf32> to vector<2x16x32xf32>
    %114 = arith.addf %112, %113 : vector<2x16x32xf32>
    %115 = math.tanh %114 : vector<2x16x32xf32>
    %116 = vector.shape_cast %115 : vector<2x16x32xf32> to vector<32x32xf32>
    %c0_35 = arith.constant 0 : index
    %c0_36 = arith.constant 0 : index
    %117 = vector.load %arg7[%c0_35, %c0_36] : memref<32x8xf32, #tpu.memory_space<vmem>>, vector<32x8xf32>
    %cst_37 = arith.constant dense<0.000000e+00> : vector<32x8xf32>
    %118 = tpu.matmul %116, %117, %cst_37 {dimension_numbers = #tpu.dot_dimension_numbers<[1], [0], [0], [1], [0, 0, 1, 1], [], []>} : vector<32x32xf32>, vector<32x8xf32>, vector<32x8xf32> -> vector<32x8xf32>
    %119 = vector.shape_cast %118 : vector<32x8xf32> to vector<2x16x8xf32>
    %c0_38 = arith.constant 0 : index
    %c0_39 = arith.constant 0 : index
    %120 = vector.load %arg8[%c0_38, %c0_39] : memref<1x8xf32, #tpu.memory_space<vmem>>, vector<1x8xf32>
    %121 = vector.shape_cast %120 : vector<1x8xf32> to vector<1x1x8xf32>
    %122 = vector.broadcast %121 : vector<1x1x8xf32> to vector<2x16x8xf32>
    %123 = arith.addf %119, %122 : vector<2x16x8xf32>
    %124 = tpu.transpose %123, [0, 2, 1] : vector<2x16x8xf32> -> vector<2x8x16xf32>
    %c0_40 = arith.constant 0 : index
    %c0_41 = arith.constant 0 : index
    %c0_42 = arith.constant 0 : index
    %125 = vector.load %arg9[%c0_40, %c0_41, %c0_42] : memref<2x8x16xf32, #tpu.memory_space<vmem>>, vector<2x8x16xf32>
    tpu.vector_store %arg9[%c0_40, %c0_41, %c0_42], %124 {strides = array<i32>} : memref<2x8x16xf32, #tpu.memory_space<vmem>>, vector<2x8x16xf32>,
    return
  }
}

</mosaic_0001>

<llo_original>
// kernel: tpu_custom_call.1
$region0: #{tpu_custom_call.1}
  #allocation0 [shape = 'u32[]', space=smem, size = 0x4, offset = 0x4, fixed_abs, tag = 'smem constant byte address 0x4 - core index']
  #allocation1 [shape = 'u32[144,128]{1,0:T(1,128)}', space=vmem, size = 0x12000, scoped, tag = 'internal scratch']
  %s0 = inlined_call_operand.vmem [shape: f32[2,8,16], index: 0, kind: input, shape index: {}]
  %s1 = inlined_call_operand.vmem [shape: f32[8,32], index: 1, kind: input, shape index: {}]
  %s2 = inlined_call_operand.vmem [shape: f32[1,32], index: 2, kind: input, shape index: {}]
  %s3 = inlined_call_operand.vmem [shape: f32[1,32], index: 3, kind: input, shape index: {}]
  %s4 = inlined_call_operand.vmem [shape: f32[2,160,32], index: 4, kind: input, shape index: {}]
  %s5 = inlined_call_operand.vmem [shape: f32[2,1,32], index: 5, kind: input, shape index: {}]
  %s6 = inlined_call_operand.vmem [shape: f32[2,1,32], index: 6, kind: input, shape index: {}]
  %s7 = inlined_call_operand.vmem [shape: f32[32,8], index: 7, kind: input, shape index: {}]
  %s8 = inlined_call_operand.vmem [shape: f32[1,8], index: 8, kind: input, shape index: {}]
  %s9 = inlined_call_operand.hbm [shape: f32[2,8,16], index: 9, kind: output, shape index: {}]
  %s10 = sld [smem:[#allocation0]]
  $region46: #{tpu_custom_call.1} parent=0
    _
  %s12 = ssub.s32 1, %s10
  %s13 = scalar_select 0, %s12, %s10
  $region1: #{tpu_custom_call.1} parent=0
    #allocation2 [shape = 'u8[8192]{0}', space=vmem, size = 0x2000, scoped, tag = 'output window, operand 0, single buffered']
    #allocation3 [shape = 's32[1]{0}', space=sflag, size = 0x4, scoped, tag = 'scoped memory for tpu_custom_call.1']
    %14 = vsyncpa [#allocation3], 0
    // Predicated region
    $region2: #{tpu_custom_call.1} parent=1 // pred_check
      _
    $region3: #{tpu_custom_call.1} parent=1 // pred_check_branch
      %16 = sbr.rel (0) target = $region5
    $region4: #{tpu_custom_call.1} parent=1 // pred_region
      _
    $region5: #{tpu_custom_call.1} parent=1 // pred_fallthru
      _
    // Predicated region
    $region6: #{tpu_custom_call.1} parent=1 // pred_check
      _
    $region7: #{tpu_custom_call.1} parent=1 // pred_check_branch
      %18 = sbr.rel (0) target = $region9
    $region8: #{tpu_custom_call.1} parent=1 // pred_region
      _
    $region9: #{tpu_custom_call.1} parent=1 // pred_fallthru
      _
    // Predicated region
    $region10: #{tpu_custom_call.1} parent=1 // pred_check
      _
    $region11: #{tpu_custom_call.1} parent=1 // pred_check_branch
      %20 = sbr.rel (0) target = $region13
    $region12: #{tpu_custom_call.1} parent=1 // pred_region
      _
    $region13: #{tpu_custom_call.1} parent=1 // pred_fallthru
      _
    // Predicated region
    $region14: #{tpu_custom_call.1} parent=1 // pred_check
      _
    $region15: #{tpu_custom_call.1} parent=1 // pred_check_branch
      %22 = sbr.rel (0) target = $region17
    $region16: #{tpu_custom_call.1} parent=1 // pred_region
      _
    $region17: #{tpu_custom_call.1} parent=1 // pred_fallthru
      _
    // Predicated region
    $region18: #{tpu_custom_call.1} parent=1 // pred_check
      _
    $region19: #{tpu_custom_call.1} parent=1 // pred_check_branch
      %24 = sbr.rel (0) target = $region21
    $region20: #{tpu_custom_call.1} parent=1 // pred_region
      _
    $region21: #{tpu_custom_call.1} parent=1 // pred_fallthru
      _
    // Predicated region
    $region22: #{tpu_custom_call.1} parent=1 // pred_check
      _
    $region23: #{tpu_custom_call.1} parent=1 // pred_check_branch
      %26 = sbr.rel (0) target = $region25
    $region24: #{tpu_custom_call.1} parent=1 // pred_region
      _
    $region25: #{tpu_custom_call.1} parent=1 // pred_fallthru
      _
    // Predicated region
    $region26: #{tpu_custom_call.1} parent=1 // pred_check
      _
    $region27: #{tpu_custom_call.1} parent=1 // pred_check_branch
      %28 = sbr.rel (0) target = $region29
    $region28: #{tpu_custom_call.1} parent=1 // pred_region
      _
    $region29: #{tpu_custom_call.1} parent=1 // pred_fallthru
      _
    // Predicated region
    $region30: #{tpu_custom_call.1} parent=1 // pred_check
      _
    $region31: #{tpu_custom_call.1} parent=1 // pred_check_branch
      %30 = sbr.rel (0) target = $region33
    $region32: #{tpu_custom_call.1} parent=1 // pred_region
      _
    $region33: #{tpu_custom_call.1} parent=1 // pred_fallthru
      _
    // Predicated region
    $region34: #{tpu_custom_call.1} parent=1 // pred_check
      _
    $region35: #{tpu_custom_call.1} parent=1 // pred_check_branch
      %32 = sbr.rel (0) target = $region37
    $region36: #{tpu_custom_call.1} parent=1 // pred_region
      _
    $region37: #{tpu_custom_call.1} parent=1 // pred_fallthru
      _
    %v33 = vld [vmem:[%s0] sm:$0xff]
    %v34 = vld [vmem:[%s0 + $0x8] sm:$0xff]
    %35 = vxpose.xlu0.b32.start [1/16] %v33, 128
    %36 = vxpose.xlu0.b32.cont [2/16] 0.0, 128
    %37 = vxpose.xlu0.b32.cont [3/16] 0.0, 128
    %38 = vxpose.xlu0.b32.cont [4/16] 0.0, 128
    %39 = vxpose.xlu0.b32.cont [5/16] 0.0, 128
    %40 = vxpose.xlu0.b32.cont [6/16] 0.0, 128
    %41 = vxpose.xlu0.b32.cont [7/16] 0.0, 128
    %42 = vxpose.xlu0.b32.cont [8/16] 0.0, 128
    %43 = vxpose.xlu0.b32.cont [9/16] 0.0, 128
    %44 = vxpose.xlu0.b32.cont [10/16] 0.0, 128
    %45 = vxpose.xlu0.b32.cont [11/16] 0.0, 128
    %46 = vxpose.xlu0.b32.cont [12/16] 0.0, 128
    %47 = vxpose.xlu0.b32.cont [13/16] 0.0, 128
    %48 = vxpose.xlu0.b32.cont [14/16] 0.0, 128
    %49 = vxpose.xlu0.b32.cont [15/16] 0.0, 128
    %50 = vxpose.xlu0.b32.end [16/16] 0.0, 128
    %v51 = vpop.trf.xlu0
    %v52 = vpop.trf.xlu0
    %v53 = vpop.trf.xlu0
    %v54 = vpop.trf.xlu0
    %v55 = vpop.trf.xlu0
    %v56 = vpop.trf.xlu0
    %v57 = vpop.trf.xlu0
    %v58 = vpop.trf.xlu0
    %v59 = vpop.trf.xlu0
    %v60 = vpop.trf.xlu0
    %v61 = vpop.trf.xlu0
    %v62 = vpop.trf.xlu0
    %v63 = vpop.trf.xlu0
    %v64 = vpop.trf.xlu0
    %v65 = vpop.trf.xlu0
    %v66 = vpop.trf.xlu0
    %67 = vxpose.xlu0.b32.start [1/16] %v34, 128
    %68 = vxpose.xlu0.b32.cont [2/16] 0.0, 128
    %69 = vxpose.xlu0.b32.cont [3/16] 0.0, 128
    %70 = vxpose.xlu0.b32.cont [4/16] 0.0, 128
    %71 = vxpose.xlu0.b32.cont [5/16] 0.0, 128
    %72 = vxpose.xlu0.b32.cont [6/16] 0.0, 128
    %73 = vxpose.xlu0.b32.cont [7/16] 0.0, 128
    %74 = vxpose.xlu0.b32.cont [8/16] 0.0, 128
    %75 = vxpose.xlu0.b32.cont [9/16] 0.0, 128
    %76 = vxpose.xlu0.b32.cont [10/16] 0.0, 128
    %77 = vxpose.xlu0.b32.cont [11/16] 0.0, 128
    %78 = vxpose.xlu0.b32.cont [12/16] 0.0, 128
    %79 = vxpose.xlu0.b32.cont [13/16] 0.0, 128
    %80 = vxpose.xlu0.b32.cont [14/16] 0.0, 128
    %81 = vxpose.xlu0.b32.cont [15/16] 0.0, 128
    %82 = vxpose.xlu0.b32.end [16/16] 0.0, 128
    %v83 = vpop.trf.xlu0
    %v84 = vpop.trf.xlu0
    %v85 = vpop.trf.xlu0
    %v86 = vpop.trf.xlu0
    %v87 = vpop.trf.xlu0
    %v88 = vpop.trf.xlu0
    %v89 = vpop.trf.xlu0
    %v90 = vpop.trf.xlu0
    %v91 = vpop.trf.xlu0
    %v92 = vpop.trf.xlu0
    %v93 = vpop.trf.xlu0
    %v94 = vpop.trf.xlu0
    %v95 = vpop.trf.xlu0
    %v96 = vpop.trf.xlu0
    %v97 = vpop.trf.xlu0
    %v98 = vpop.trf.xlu0
    %v99 = vld [vmem:[%s1] sm:$0xff]
    %vm100 = vcmask 64512
    %v102 = vsel %vm100, %v51, 0
    %v105 = vsel %vm100, %v52, 0
    %v108 = vsel %vm100, %v83, 0
    %v111 = vsel %vm100, %v84, 0
    %113 = vmatprep.subr.mxu0 0.0
    %114 = vmatpush1.msra.mxu0 %v99
    %115 = vmatprep.subr.mxu0 0.0
    %116 = vmatpush1.msra.mxu0 0.0
    %117 = vmatprep.subr.mxu0 0.0
    %118 = vmatpush1.msra.mxu0 0.0
    %119 = vmatprep.subr.mxu0 0.0
    %120 = vmatpush1.msra.mxu0 0.0
    %121 = vmatprep.subr.mxu0 0.0
    %122 = vmatpush1.msra.mxu0 0.0
    %123 = vmatprep.subr.mxu0 0.0
    %124 = vmatpush1.msra.mxu0 0.0
    %125 = vmatprep.subr.mxu0 0.0
    %126 = vmatpush1.msra.mxu0 0.0
    %127 = vmatprep.subr.mxu0 0.0
    %128 = vmatpush1.msra.mxu0 0.0
    %129 = vmatprep.subr.mxu0 0.0
    %130 = vmatpush1.msra.mxu0 0.0
    %131 = vmatprep.subr.mxu0 0.0
    %132 = vmatpush1.msra.mxu0 0.0
    %133 = vmatprep.subr.mxu0 0.0
    %134 = vmatpush1.msra.mxu0 0.0
    %135 = vmatprep.subr.mxu0 0.0
    %136 = vmatpush1.msra.mxu0 0.0
    %137 = vmatprep.subr.mxu0 0.0
    %138 = vmatpush1.msra.mxu0 0.0
    %139 = vmatprep.subr.mxu0 0.0
    %140 = vmatpush1.msra.mxu0 0.0
    %141 = vmatprep.subr.mxu0 0.0
    %142 = vmatpush1.msra.mxu0 0.0
    %143 = vmatprep.subr.mxu0 0.0
    %144 = vmatpush1.msra.mxu0 0.0
    %145 = vmatprep.subr.mxu0 0.0
    %146 = vmatpush1.msra.mxu0 0.0
    %147 = vmatprep.subr.mxu0 0.0
    %148 = vmatpush1.msra.mxu0 0.0
    %149 = vmatprep.subr.mxu0 0.0
    %150 = vmatpush1.msra.mxu0 0.0
    %151 = vmatprep.subr.mxu0 0.0
    %152 = vmatpush1.msra.mxu0 0.0
    %153 = vmatprep.subr.mxu0 0.0
    %154 = vmatpush1.msra.mxu0 0.0
    %155 = vmatprep.subr.mxu0 0.0
    %156 = vmatpush1.msra.mxu0 0.0
    %157 = vmatprep.subr.mxu0 0.0
    %158 = vmatpush1.msra.mxu0 0.0
    %159 = vmatprep.subr.mxu0 0.0
    %160 = vmatpush1.msra.mxu0 0.0
    %161 = vmatprep.subr.mxu0 0.0
    %162 = vmatpush1.msra.mxu0 0.0
    %163 = vmatprep.subr.mxu0 0.0
    %164 = vmatpush1.msra.mxu0 0.0
    %165 = vmatprep.subr.mxu0 0.0
    %166 = vmatpush1.msra.mxu0 0.0
    %167 = vmatprep.subr.mxu0 0.0
    %168 = vmatpush1.msra.mxu0 0.0
    %169 = vmatprep.subr.mxu0 0.0
    %170 = vmatpush1.msra.mxu0 0.0
    %171 = vmatprep.subr.mxu0 0.0
    %172 = vmatpush1.msra.mxu0 0.0
    %173 = vmatprep.subr.mxu0 0.0
    %174 = vmatpush1.msra.mxu0 0.0
    %175 = vmatprep.subr.mxu0 0.0
    %176 = vmatpush1.msra.mxu0 0.0
    %177 = vmatprep.mubr.f32.mxu0 0.0
    %178 = vmatmul.mubr.f32.gmra.mrb[0].mxu0 %v102
    %v179 = vpop.f32.mrb[0].mxu0
    %v180 = vadd.f32 0.0, %v179
    %v181 = vpop.f32.mrb[0].mxu0
    %182 = vmatprep.mubr.f32.mxu0 0.0
    %183 = vmatmul.mubr.f32.gmra.mrb[0].mxu0 %v105
    %v184 = vpop.f32.mrb[0].mxu0
    %v185 = vadd.f32 0.0, %v184
    %v186 = vpop.f32.mrb[0].mxu0
    %187 = vmatprep.mubr.f32.mxu0 0.0
    %188 = vmatmul.mubr.f32.gmra.mrb[0].mxu0 %v108
    %v189 = vpop.f32.mrb[0].mxu0
    %v190 = vadd.f32 0.0, %v189
    %v191 = vpop.f32.mrb[0].mxu0
    %192 = vmatprep.mubr.f32.mxu0 0.0
    %193 = vmatmul.mubr.f32.gmra.mrb[0].mxu0 %v111
    %v194 = vpop.f32.mrb[0].mxu0
    %v195 = vadd.f32 0.0, %v194
    %v196 = vpop.f32.mrb[0].mxu0
    %197 = vdwg.mxu0
    %v198 = vld [vmem:[%s2] sm:$0x1]
    %v199 = vld [vmem:[%s3] sm:$0x1]
    %vm200 = vcmask 261120
    %v201 = vsel %vm200, %v180, 0.0
    %v202 = vsel %vm200, %v185, 0.0
    %v203 = vadd.f32 %v201, %v202
    %v204 = vsel %vm200, %v190, 0.0
    %v205 = vadd.f32 %v203, %v204
    %v206 = vsel %vm200, %v195, 0.0
    %v207 = vadd.f32 %v205, %v206
    %v208 = vrot.slane %v207, 4
    %v209 = vadd.f32 %v207, %v208
    %v210 = vrot.slane %v209, 2
    %v211 = vadd.f32 %v209, %v210
    %v212 = vrot.slane %v211, 1
    %v213 = vadd.f32 %v211, %v212
    %v214 = vrcp.pop 32.0
    %v215 = vmul.f32 %v213, %v214
    %v216 = vsub.f32 %v180, %v215
    %v217 = vsub.f32 %v185, %v215
    %v218 = vsub.f32 %v190, %v215
    %v219 = vsub.f32 %v195, %v215
    %v220 = vmul.f32 %v216, %v216
    %v221 = vmul.f32 %v217, %v217
    %v222 = vmul.f32 %v218, %v218
    %v223 = vmul.f32 %v219, %v219
    %v224 = vsel %vm200, %v220, 0.0
    %v225 = vsel %vm200, %v221, 0.0
    %v226 = vadd.f32 %v224, %v225
    %v227 = vsel %vm200, %v222, 0.0
    %v228 = vadd.f32 %v226, %v227
    %v229 = vsel %vm200, %v223, 0.0
    %v230 = vadd.f32 %v228, %v229
    %v231 = vrot.slane %v230, 4
    %v232 = vadd.f32 %v230, %v231
    %v233 = vrot.slane %v232, 2
    %v234 = vadd.f32 %v232, %v233
    %v235 = vrot.slane %v234, 1
    %v236 = vadd.f32 %v234, %v235
    %v237 = vmul.f32 %v236, %v214
    %v238 = vadd.f32 %v237, 1e-05
    %v239 = vrsqrt.pop %v238
    %v240 = vmul.f32 %v198, %v239
    %v241 = vmul.f32 %v215, %v240
    %v242 = vsub.f32 %v199, %v241
    %v244 = vlaneseq
    %v245 = vshrl.u32 %v244, 7
    %v246 = vsub.s32 0, %v245
    %v247 = vrot.slane %v240, %v246
    %v249 = vmul.f32 %v180, %v247
    %v250 = vmul.f32 %v185, %v247
    %v251 = vmul.f32 %v190, %v247
    %v252 = vmul.f32 %v195, %v247
    %v254 = vlaneseq
    %v255 = vshrl.u32 %v254, 7
    %v256 = vsub.s32 0, %v255
    %v257 = vrot.slane %v242, %v256
    %v259 = vadd.f32 %v249, %v257
    %v260 = vadd.f32 %v250, %v257
    %v261 = vadd.f32 %v251, %v257
    %v262 = vadd.f32 %v252, %v257
    %v263 = vtanh.pop %v259
    %v264 = vtanh.pop %v260
    %v265 = vtanh.pop %v261
    %v266 = vtanh.pop %v262
    %v267 = vld [vmem:[%s4] sm:$0xff]
    %v268 = vld [vmem:[%s4 + $0x8] sm:$0xff]
    %v269 = vld [vmem:[%s4 + $0x10] sm:$0xff]
    %v270 = vld [vmem:[%s4 + $0x18] sm:$0xff]
    %v271 = vld [vmem:[%s4 + $0x20] sm:$0xff]
    %v272 = vld [vmem:[%s4 + $0x28] sm:$0xff]
    %v273 = vld [vmem:[%s4 + $0x30] sm:$0xff]
    %v274 = vld [vmem:[%s4 + $0x38] sm:$0xff]
    %v275 = vld [vmem:[%s4 + $0x40] sm:$0xff]
    %v276 = vld [vmem:[%s4 + $0x48] sm:$0xff]
    %v277 = vld [vmem:[%s4 + $0x50] sm:$0xff]
    %v278 = vld [vmem:[%s4 + $0x58] sm:$0xff]
    %v279 = vld [vmem:[%s4 + $0x60] sm:$0xff]
    %v280 = vld [vmem:[%s4 + $0x68] sm:$0xff]
    %v281 = vld [vmem:[%s4 + $0x70] sm:$0xff]
    %v282 = vld [vmem:[%s4 + $0x78] sm:$0xff]
    %v283 = vld [vmem:[%s4 + $0x80] sm:$0xff]
    %v284 = vld [vmem:[%s4 + $0x88] sm:$0xff]
    %v285 = vld [vmem:[%s4 + $0x90] sm:$0xff]
    %v286 = vld [vmem:[%s4 + $0x98] sm:$0xff]
    %v287 = vld [vmem:[%s4 + $0xa0] sm:$0xff]
    %v288 = vld [vmem:[%s4 + $0xa8] sm:$0xff]
    %v289 = vld [vmem:[%s4 + $0xb0] sm:$0xff]
    %v290 = vld [vmem:[%s4 + $0xb8] sm:$0xff]
    %v291 = vld [vmem:[%s4 + $0xc0] sm:$0xff]
    %v292 = vld [vmem:[%s4 + $0xc8] sm:$0xff]
    %v293 = vld [vmem:[%s4 + $0xd0] sm:$0xff]
    %v294 = vld [vmem:[%s4 + $0xd8] sm:$0xff]
    %v295 = vld [vmem:[%s4 + $0xe0] sm:$0xff]
    %v296 = vld [vmem:[%s4 + $0xe8] sm:$0xff]
    %v297 = vld [vmem:[%s4 + $0xf0] sm:$0xff]
    %v298 = vld [vmem:[%s4 + $0xf8] sm:$0xff]
    %v299 = vld [vmem:[%s4 + $0x100] sm:$0xff]
    %v300 = vld [vmem:[%s4 + $0x108] sm:$0xff]
    %v301 = vld [vmem:[%s4 + $0x110] sm:$0xff]
    %v302 = vld [vmem:[%s4 + $0x118] sm:$0xff]
    %v303 = vld [vmem:[%s4 + $0x120] sm:$0xff]
    %v304 = vld [vmem:[%s4 + $0x128] sm:$0xff]
    %v305 = vld [vmem:[%s4 + $0x130] sm:$0xff]
    %v306 = vld [vmem:[%s4 + $0x138] sm:$0xff]
    %v307 = vld [vmem:[%s5] sm:$0x1]
    %v308 = vld [vmem:[%s5 + $0x1] sm:$0x1]
    %v309 = vld [vmem:[%s6] sm:$0x1]
    %v310 = vld [vmem:[%s6 + $0x1] sm:$0x1]
    %vm315 = vcmask 1041408
    %v316 = vrot.slane %v263, 6
    %v317 = vrot.slane %v264, 6
    %v318 = vsel %vm315, %v316, %v317
    %v319 = vrot.slane %v265, 6
    %v320 = vrot.slane %v266, 6
    %v321 = vsel %vm315, %v319, %v320
    %v328 = vsel %vm315, 0.0, %v316
    %v329 = vsel %vm315, 0.0, %v319
    %v330 = vsel %vm315, %v317, 0.0
    %v331 = vsel %vm315, %v320, 0.0
    %vm336 = vcmask 1046528
    %v337 = vrot.slane %v328, 1
    %v338 = vrot.slane %v318, 1
    %v339 = vsel %vm336, %v337, %v338
    %v340 = vrot.slane %v330, 1
    %v341 = vsel %vm336, %v338, %v340
    %v342 = vrot.slane %v329, 1
    %v343 = vrot.slane %v321, 1
    %v344 = vsel %vm336, %v342, %v343
    %v345 = vrot.slane %v331, 1
    %v346 = vsel %vm336, %v343, %v345
    %347 = vrot.lane.b32.xlu0 %v339, 32
    %v348 = vpop.permute.xlu0 %347
    %349 = vrot.lane.b32.xlu0 %v341, 32
    %v350 = vpop.permute.xlu0 %349
    %351 = vrot.lane.b32.xlu0 %v344, 32
    %v352 = vpop.permute.xlu0 %351
    %353 = vrot.lane.b32.xlu0 %v346, 32
    %v354 = vpop.permute.xlu0 %353
    %vm359 = vcmask 1045504
    %v360 = vrot.slane %v328, 2
    %v361 = vrot.slane %v318, 2
    %v362 = vsel %vm359, %v360, %v361
    %v363 = vrot.slane %v330, 2
    %v364 = vsel %vm359, %v361, %v363
    %v365 = vrot.slane %v329, 2
    %v366 = vrot.slane %v321, 2
    %v367 = vsel %vm359, %v365, %v366
    %v368 = vrot.slane %v331, 2
    %v369 = vsel %vm359, %v366, %v368
    %370 = vrot.lane.b32.xlu0 %v362, 64
    %v371 = vpop.permute.xlu0 %370
    %372 = vrot.lane.b32.xlu0 %v364, 64
    %v373 = vpop.permute.xlu0 %372
    %374 = vrot.lane.b32.xlu0 %v367, 64
    %v375 = vpop.permute.xlu0 %374
    %376 = vrot.lane.b32.xlu0 %v369, 64
    %v377 = vpop.permute.xlu0 %376
    %vm382 = vcmask 1044480
    %v383 = vrot.slane %v328, 3
    %v384 = vrot.slane %v318, 3
    %v385 = vsel %vm382, %v383, %v384
    %v386 = vrot.slane %v330, 3
    %v387 = vsel %vm382, %v384, %v386
    %v388 = vrot.slane %v329, 3
    %v389 = vrot.slane %v321, 3
    %v390 = vsel %vm382, %v388, %v389
    %v391 = vrot.slane %v331, 3
    %v392 = vsel %vm382, %v389, %v391
    %393 = vrot.lane.b32.xlu0 %v385, 96
    %v394 = vpop.permute.xlu0 %393
    %395 = vrot.lane.b32.xlu0 %v387, 96
    %v396 = vpop.permute.xlu0 %395
    %397 = vrot.lane.b32.xlu0 %v390, 96
    %v398 = vpop.permute.xlu0 %397
    %399 = vrot.lane.b32.xlu0 %v392, 96
    %v400 = vpop.permute.xlu0 %399
    %vm405 = vcmask 1043456
    %v406 = vrot.slane %v328, 4
    %v407 = vrot.slane %v318, 4
    %v408 = vsel %vm405, %v406, %v407
    %v409 = vrot.slane %v330, 4
    %v410 = vsel %vm405, %v407, %v409
    %v411 = vrot.slane %v329, 4
    %v412 = vrot.slane %v321, 4
    %v413 = vsel %vm405, %v411, %v412
    %v414 = vrot.slane %v331, 4
    %v415 = vsel %vm405, %v412, %v414
    %v416 = vsel %vm200, %v328, %v348
    %v417 = vsel %vm200, %v318, %v350
    %v418 = vsel %vm200, %v329, %v352
    %v419 = vsel %vm200, %v321, %v354
    %vm420 = vcmask 523264
    %v421 = vsel %vm420, %v416, %v371
    %v422 = vsel %vm420, %v417, %v373
    %v423 = vsel %vm420, %v418, %v375
    %v424 = vsel %vm420, %v419, %v377
    %vm425 = vcmask 785408
    %v426 = vsel %vm425, %v421, %v394
    %v427 = vsel %vm425, %v422, %v396
    %v428 = vsel %vm425, %v423, %v398
    %v429 = vsel %vm425, %v424, %v400
    %v430 = vsel %vm200, %v408, 0
    %v432 = vsel %vm200, %v410, 0
    %v434 = vsel %vm200, %v413, 0
    %v436 = vsel %vm200, %v415, 0
    %438 = vmatprep.subr.mxu0 0.0
    %439 = vmatpush1.msra.mxu0 %v267
    %440 = vmatprep.subr.mxu0 0.0
    %441 = vmatpush1.msra.mxu0 %v268
    %442 = vmatprep.subr.mxu0 0.0
    %443 = vmatpush1.msra.mxu0 %v269
    %444 = vmatprep.subr.mxu0 0.0
    %445 = vmatpush1.msra.mxu0 %v270
    %446 = vmatprep.subr.mxu0 0.0
    %447 = vmatpush1.msra.mxu0 %v271
    %448 = vmatprep.subr.mxu0 0.0
    %449 = vmatpush1.msra.mxu0 %v272
    %450 = vmatprep.subr.mxu0 0.0
    %451 = vmatpush1.msra.mxu0 %v273
    %452 = vmatprep.subr.mxu0 0.0
    %453 = vmatpush1.msra.mxu0 %v274
    %454 = vmatprep.subr.mxu0 0.0
    %455 = vmatpush1.msra.mxu0 %v275
    %456 = vmatprep.subr.mxu0 0.0
    %457 = vmatpush1.msra.mxu0 %v276
    %458 = vmatprep.subr.mxu0 0.0
    %459 = vmatpush1.msra.mxu0 %v277
    %460 = vmatprep.subr.mxu0 0.0
    %461 = vmatpush1.msra.mxu0 %v278
    %462 = vmatprep.subr.mxu0 0.0
    %463 = vmatpush1.msra.mxu0 %v279
    %464 = vmatprep.subr.mxu0 0.0
    %465 = vmatpush1.msra.mxu0 %v280
    %466 = vmatprep.subr.mxu0 0.0
    %467 = vmatpush1.msra.mxu0 %v281
    %468 = vmatprep.subr.mxu0 0.0
    %469 = vmatpush1.msra.mxu0 %v282
    %470 = vmatprep.subr.mxu0 0.0
    %471 = vmatpush1.msra.mxu0 %v283
    %472 = vmatprep.subr.mxu0 0.0
    %473 = vmatpush1.msra.mxu0 %v284
    %474 = vmatprep.subr.mxu0 0.0
    %475 = vmatpush1.msra.mxu0 %v285
    %476 = vmatprep.subr.mxu0 0.0
    %477 = vmatpush1.msra.mxu0 %v286
    %478 = vmatprep.subr.mxu0 0.0
    %479 = vmatpush1.msra.mxu0 0.0
    %480 = vmatprep.subr.mxu0 0.0
    %481 = vmatpush1.msra.mxu0 0.0
    %482 = vmatprep.subr.mxu0 0.0
    %483 = vmatpush1.msra.mxu0 0.0
    %484 = vmatprep.subr.mxu0 0.0
    %485 = vmatpush1.msra.mxu0 0.0
    %486 = vmatprep.subr.mxu0 0.0
    %487 = vmatpush1.msra.mxu0 0.0
    %488 = vmatprep.subr.mxu0 0.0
    %489 = vmatpush1.msra.mxu0 0.0
    %490 = vmatprep.subr.mxu0 0.0
    %491 = vmatpush1.msra.mxu0 0.0
    %492 = vmatprep.subr.mxu0 0.0
    %493 = vmatpush1.msra.mxu0 0.0
    %494 = vmatprep.subr.mxu0 0.0
    %495 = vmatpush1.msra.mxu0 0.0
    %496 = vmatprep.subr.mxu0 0.0
    %497 = vmatpush1.msra.mxu0 0.0
    %498 = vmatprep.subr.mxu0 0.0
    %499 = vmatpush1.msra.mxu0 0.0
    %500 = vmatprep.subr.mxu0 0.0
    %501 = vmatpush1.msra.mxu0 0.0
    %502 = vmatprep.mubr.f32.mxu0 %v430
    %503 = vmatmul.mubr.f32.gmra.mrb[0].mxu0 %v426
    %v504 = vpop.f32.mrb[0].mxu0
    %v505 = vadd.f32 0.0, %v504
    %v506 = vpop.f32.mrb[0].mxu0
    %507 = vmatprep.mubr.f32.mxu0 %v432
    %508 = vmatmul.mubr.f32.gmra.mrb[0].mxu0 %v427
    %v509 = vpop.f32.mrb[0].mxu0
    %v510 = vadd.f32 0.0, %v509
    %v511 = vpop.f32.mrb[0].mxu0
    %512 = vmatprep.mubr.f32.mxu0 %v434
    %513 = vmatmul.mubr.f32.gmra.mrb[0].mxu0 %v428
    %v514 = vpop.f32.mrb[0].mxu0
    %v515 = vadd.f32 0.0, %v514
    %v516 = vpop.f32.mrb[0].mxu0
    %517 = vmatprep.mubr.f32.mxu0 %v436
    %518 = vmatmul.mubr.f32.gmra.mrb[0].mxu0 %v429
    %v519 = vpop.f32.mrb[0].mxu0
    %v520 = vadd.f32 0.0, %v519
    %v521 = vpop.f32.mrb[0].mxu0
    %522 = vdwg.mxu0
    %v523 = vsel %vm200, %v505, 0.0
    %v524 = vsel %vm200, %v510, 0.0
    %v525 = vadd.f32 %v523, %v524
    %v526 = vsel %vm200, %v515, 0.0
    %v527 = vadd.f32 %v525, %v526
    %v528 = vsel %vm200, %v520, 0.0
    %v529 = vadd.f32 %v527, %v528
    %v530 = vrot.slane %v529, 4
    %v531 = vadd.f32 %v529, %v530
    %v532 = vrot.slane %v531, 2
    %v533 = vadd.f32 %v531, %v532
    %v534 = vrot.slane %v533, 1
    %v535 = vadd.f32 %v533, %v534
    %v536 = vmul.f32 %v535, %v214
    %v537 = vsub.f32 %v505, %v536
    %v538 = vsub.f32 %v510, %v536
    %v539 = vsub.f32 %v515, %v536
    %v540 = vsub.f32 %v520, %v536
    %v541 = vmul.f32 %v537, %v537
    %v542 = vmul.f32 %v538, %v538
    %v543 = vmul.f32 %v539, %v539
    %v544 = vmul.f32 %v540, %v540
    %v545 = vsel %vm200, %v541, 0.0
    %v546 = vsel %vm200, %v542, 0.0
    %v547 = vadd.f32 %v545, %v546
    %v548 = vsel %vm200, %v543, 0.0
    %v549 = vadd.f32 %v547, %v548
    %v550 = vsel %vm200, %v544, 0.0
    %v551 = vadd.f32 %v549, %v550
    %v552 = vrot.slane %v551, 4
    %v553 = vadd.f32 %v551, %v552
    %v554 = vrot.slane %v553, 2
    %v555 = vadd.f32 %v553, %v554
    %v556 = vrot.slane %v555, 1
    %v557 = vadd.f32 %v555, %v556
    %v558 = vmul.f32 %v557, %v214
    %v559 = vadd.f32 %v558, 1e-05
    %v560 = vrsqrt.pop %v559
    %v561 = vmul.f32 %v307, %v560
    %v562 = vmul.f32 %v536, %v561
    %v563 = vsub.f32 %v309, %v562
    %v565 = vlaneseq
    %v566 = vshrl.u32 %v565, 7
    %v567 = vsub.s32 0, %v566
    %v568 = vrot.slane %v561, %v567
    %v570 = vmul.f32 %v505, %v568
    %v571 = vmul.f32 %v510, %v568
    %v572 = vmul.f32 %v515, %v568
    %v573 = vmul.f32 %v520, %v568
    %v575 = vlaneseq
    %v576 = vshrl.u32 %v575, 7
    %v577 = vsub.s32 0, %v576
    %v578 = vrot.slane %v563, %v577
    %v580 = vadd.f32 %v570, %v578
    %v581 = vadd.f32 %v571, %v578
    %v582 = vadd.f32 %v572, %v578
    %v583 = vadd.f32 %v573, %v578
    %v584 = vtanh.pop %v580
    %v585 = vtanh.pop %v581
    %v586 = vtanh.pop %v582
    %v587 = vtanh.pop %v583
    %v592 = vrot.slane %v584, 6
    %v593 = vrot.slane %v585, 6
    %v594 = vsel %vm315, %v592, %v593
    %v595 = vrot.slane %v586, 6
    %v596 = vrot.slane %v587, 6
    %v597 = vsel %vm315, %v595, %v596
    %v604 = vsel %vm315, 0.0, %v592
    %v605 = vsel %vm315, 0.0, %v595
    %v606 = vsel %vm315, %v593, 0.0
    %v607 = vsel %vm315, %v596, 0.0
    %v612 = vrot.slane %v604, 1
    %v613 = vrot.slane %v594, 1
    %v614 = vsel %vm336, %v612, %v613
    %v615 = vrot.slane %v606, 1
    %v616 = vsel %vm336, %v613, %v615
    %v617 = vrot.slane %v605, 1
    %v618 = vrot.slane %v597, 1
    %v619 = vsel %vm336, %v617, %v618
    %v620 = vrot.slane %v607, 1
    %v621 = vsel %vm336, %v618, %v620
    %622 = vrot.lane.b32.xlu0 %v614, 32
    %v623 = vpop.permute.xlu0 %622
    %624 = vrot.lane.b32.xlu0 %v616, 32
    %v625 = vpop.permute.xlu0 %624
    %626 = vrot.lane.b32.xlu0 %v619, 32
    %v627 = vpop.permute.xlu0 %626
    %628 = vrot.lane.b32.xlu0 %v621, 32
    %v629 = vpop.permute.xlu0 %628
    %v634 = vrot.slane %v604, 2
    %v635 = vrot.slane %v594, 2
    %v636 = vsel %vm359, %v634, %v635
    %v637 = vrot.slane %v606, 2
    %v638 = vsel %vm359, %v635, %v637
    %v639 = vrot.slane %v605, 2
    %v640 = vrot.slane %v597, 2
    %v641 = vsel %vm359, %v639, %v640
    %v642 = vrot.slane %v607, 2
    %v643 = vsel %vm359, %v640, %v642
    %644 = vrot.lane.b32.xlu0 %v636, 64
    %v645 = vpop.permute.xlu0 %644
    %646 = vrot.lane.b32.xlu0 %v638, 64
    %v647 = vpop.permute.xlu0 %646
    %648 = vrot.lane.b32.xlu0 %v641, 64
    %v649 = vpop.permute.xlu0 %648
    %650 = vrot.lane.b32.xlu0 %v643, 64
    %v651 = vpop.permute.xlu0 %650
    %v656 = vrot.slane %v604, 3
    %v657 = vrot.slane %v594, 3
    %v658 = vsel %vm382, %v656, %v657
    %v659 = vrot.slane %v606, 3
    %v660 = vsel %vm382, %v657, %v659
    %v661 = vrot.slane %v605, 3
    %v662 = vrot.slane %v597, 3
    %v663 = vsel %vm382, %v661, %v662
    %v664 = vrot.slane %v607, 3
    %v665 = vsel %vm382, %v662, %v664
    %666 = vrot.lane.b32.xlu0 %v658, 96
    %v667 = vpop.permute.xlu0 %666
    %668 = vrot.lane.b32.xlu0 %v660, 96
    %v669 = vpop.permute.xlu0 %668
    %670 = vrot.lane.b32.xlu0 %v663, 96
    %v671 = vpop.permute.xlu0 %670
    %672 = vrot.lane.b32.xlu0 %v665, 96
    %v673 = vpop.permute.xlu0 %672
    %v678 = vrot.slane %v604, 4
    %v679 = vrot.slane %v594, 4
    %v680 = vsel %vm405, %v678, %v679
    %v681 = vrot.slane %v606, 4
    %v682 = vsel %vm405, %v679, %v681
    %v683 = vrot.slane %v605, 4
    %v684 = vrot.slane %v597, 4
    %v685 = vsel %vm405, %v683, %v684
    %v686 = vrot.slane %v607, 4
    %v687 = vsel %vm405, %v684, %v686
    %v688 = vsel %vm200, %v604, %v623
    %v689 = vsel %vm200, %v594, %v625
    %v690 = vsel %vm200, %v605, %v627
    %v691 = vsel %vm200, %v597, %v629
    %v692 = vsel %vm420, %v688, %v645
    %v693 = vsel %vm420, %v689, %v647
    %v694 = vsel %vm420, %v690, %v649
    %v695 = vsel %vm420, %v691, %v651
    %v696 = vsel %vm425, %v692, %v667
    %v697 = vsel %vm425, %v693, %v669
    %v698 = vsel %vm425, %v694, %v671
    %v699 = vsel %vm425, %v695, %v673
    %v700 = vsel %vm200, %v680, 0
    %v702 = vsel %vm200, %v682, 0
    %v704 = vsel %vm200, %v685, 0
    %v706 = vsel %vm200, %v687, 0
    %708 = vmatprep.subr.mxu0 0.0
    %709 = vmatpush1.msra.mxu0 %v287
    %710 = vmatprep.subr.mxu0 0.0
    %711 = vmatpush1.msra.mxu0 %v288
    %712 = vmatprep.subr.mxu0 0.0
    %713 = vmatpush1.msra.mxu0 %v289
    %714 = vmatprep.subr.mxu0 0.0
    %715 = vmatpush1.msra.mxu0 %v290
    %716 = vmatprep.subr.mxu0 0.0
    %717 = vmatpush1.msra.mxu0 %v291
    %718 = vmatprep.subr.mxu0 0.0
    %719 = vmatpush1.msra.mxu0 %v292
    %720 = vmatprep.subr.mxu0 0.0
    %721 = vmatpush1.msra.mxu0 %v293
    %722 = vmatprep.subr.mxu0 0.0
    %723 = vmatpush1.msra.mxu0 %v294
    %724 = vmatprep.subr.mxu0 0.0
    %725 = vmatpush1.msra.mxu0 %v295
    %726 = vmatprep.subr.mxu0 0.0
    %727 = vmatpush1.msra.mxu0 %v296
    %728 = vmatprep.subr.mxu0 0.0
    %729 = vmatpush1.msra.mxu0 %v297
    %730 = vmatprep.subr.mxu0 0.0
    %731 = vmatpush1.msra.mxu0 %v298
    %732 = vmatprep.subr.mxu0 0.0
    %733 = vmatpush1.msra.mxu0 %v299
    %734 = vmatprep.subr.mxu0 0.0
    %735 = vmatpush1.msra.mxu0 %v300
    %736 = vmatprep.subr.mxu0 0.0
    %737 = vmatpush1.msra.mxu0 %v301
    %738 = vmatprep.subr.mxu0 0.0
    %739 = vmatpush1.msra.mxu0 %v302
    %740 = vmatprep.subr.mxu0 0.0
    %741 = vmatpush1.msra.mxu0 %v303
    %742 = vmatprep.subr.mxu0 0.0
    %743 = vmatpush1.msra.mxu0 %v304
    %744 = vmatprep.subr.mxu0 0.0
    %745 = vmatpush1.msra.mxu0 %v305
    %746 = vmatprep.subr.mxu0 0.0
    %747 = vmatpush1.msra.mxu0 %v306
    %748 = vmatprep.subr.mxu0 0.0
    %749 = vmatpush1.msra.mxu0 0.0
    %750 = vmatprep.subr.mxu0 0.0
    %751 = vmatpush1.msra.mxu0 0.0
    %752 = vmatprep.subr.mxu0 0.0
    %753 = vmatpush1.msra.mxu0 0.0
    %754 = vmatprep.subr.mxu0 0.0
    %755 = vmatpush1.msra.mxu0 0.0
    %756 = vmatprep.subr.mxu0 0.0
    %757 = vmatpush1.msra.mxu0 0.0
    %758 = vmatprep.subr.mxu0 0.0
    %759 = vmatpush1.msra.mxu0 0.0
    %760 = vmatprep.subr.mxu0 0.0
    %761 = vmatpush1.msra.mxu0 0.0
    %762 = vmatprep.subr.mxu0 0.0
    %763 = vmatpush1.msra.mxu0 0.0
    %764 = vmatprep.subr.mxu0 0.0
    %765 = vmatpush1.msra.mxu0 0.0
    %766 = vmatprep.subr.mxu0 0.0
    %767 = vmatpush1.msra.mxu0 0.0
    %768 = vmatprep.subr.mxu0 0.0
    %769 = vmatpush1.msra.mxu0 0.0
    %770 = vmatprep.subr.mxu0 0.0
    %771 = vmatpush1.msra.mxu0 0.0
    %772 = vmatprep.mubr.f32.mxu0 %v700
    %773 = vmatmul.mubr.f32.gmra.mrb[0].mxu0 %v696
    %v774 = vpop.f32.mrb[0].mxu0
    %v775 = vadd.f32 0.0, %v774
    %v776 = vpop.f32.mrb[0].mxu0
    %777 = vmatprep.mubr.f32.mxu0 %v702
    %778 = vmatmul.mubr.f32.gmra.mrb[0].mxu0 %v697
    %v779 = vpop.f32.mrb[0].mxu0
    %v780 = vadd.f32 0.0, %v779
    %v781 = vpop.f32.mrb[0].mxu0
    %782 = vmatprep.mubr.f32.mxu0 %v704
    %783 = vmatmul.mubr.f32.gmra.mrb[0].mxu0 %v698
    %v784 = vpop.f32.mrb[0].mxu0
    %v785 = vadd.f32 0.0, %v784
    %v786 = vpop.f32.mrb[0].mxu0
    %787 = vmatprep.mubr.f32.mxu0 %v706
    %788 = vmatmul.mubr.f32.gmra.mrb[0].mxu0 %v699
    %v789 = vpop.f32.mrb[0].mxu0
    %v790 = vadd.f32 0.0, %v789
    %v791 = vpop.f32.mrb[0].mxu0
    %792 = vdwg.mxu0
    %v793 = vsel %vm200, %v775, 0.0
    %v794 = vsel %vm200, %v780, 0.0
    %v795 = vadd.f32 %v793, %v794
    %v796 = vsel %vm200, %v785, 0.0
    %v797 = vadd.f32 %v795, %v796
    %v798 = vsel %vm200, %v790, 0.0
    %v799 = vadd.f32 %v797, %v798
    %v800 = vrot.slane %v799, 4
    %v801 = vadd.f32 %v799, %v800
    %v802 = vrot.slane %v801, 2
    %v803 = vadd.f32 %v801, %v802
    %v804 = vrot.slane %v803, 1
    %v805 = vadd.f32 %v803, %v804
    %v806 = vmul.f32 %v805, %v214
    %v807 = vsub.f32 %v775, %v806
    %v808 = vsub.f32 %v780, %v806
    %v809 = vsub.f32 %v785, %v806
    %v810 = vsub.f32 %v790, %v806
    %v811 = vmul.f32 %v807, %v807
    %v812 = vmul.f32 %v808, %v808
    %v813 = vmul.f32 %v809, %v809
    %v814 = vmul.f32 %v810, %v810
    %v815 = vsel %vm200, %v811, 0.0
    %v816 = vsel %vm200, %v812, 0.0
    %v817 = vadd.f32 %v815, %v816
    %v818 = vsel %vm200, %v813, 0.0
    %v819 = vadd.f32 %v817, %v818
    %v820 = vsel %vm200, %v814, 0.0
    %v821 = vadd.f32 %v819, %v820
    %v822 = vrot.slane %v821, 4
    %v823 = vadd.f32 %v821, %v822
    %v824 = vrot.slane %v823, 2
    %v825 = vadd.f32 %v823, %v824
    %v826 = vrot.slane %v825, 1
    %v827 = vadd.f32 %v825, %v826
    %v828 = vmul.f32 %v827, %v214
    %v829 = vadd.f32 %v828, 1e-05
    %v830 = vrsqrt.pop %v829
    %v831 = vmul.f32 %v308, %v830
    %v832 = vmul.f32 %v806, %v831
    %v833 = vsub.f32 %v310, %v832
    %v835 = vlaneseq
    %v836 = vshrl.u32 %v835, 7
    %v837 = vsub.s32 0, %v836
    %v838 = vrot.slane %v831, %v837
    %v840 = vmul.f32 %v775, %v838
    %v841 = vmul.f32 %v780, %v838
    %v842 = vmul.f32 %v785, %v838
    %v843 = vmul.f32 %v790, %v838
    %v845 = vlaneseq
    %v846 = vshrl.u32 %v845, 7
    %v847 = vsub.s32 0, %v846
    %v848 = vrot.slane %v833, %v847
    %v850 = vadd.f32 %v840, %v848
    %v851 = vadd.f32 %v841, %v848
    %v852 = vadd.f32 %v842, %v848
    %v853 = vadd.f32 %v843, %v848
    %v854 = vtanh.pop %v850
    %v855 = vtanh.pop %v851
    %v856 = vtanh.pop %v852
    %v857 = vtanh.pop %v853
    %v858 = vld [vmem:[%s7] sm:$0xff]
    %v859 = vld [vmem:[%s7 + $0x8] sm:$0xff]
    %v860 = vld [vmem:[%s7 + $0x10] sm:$0xff]
    %v861 = vld [vmem:[%s7 + $0x18] sm:$0xff]
    %v863 = vsel %vm200, %v854, 0
    %v866 = vsel %vm200, %v855, 0
    %v869 = vsel %vm200, %v856, 0
    %v872 = vsel %vm200, %v857, 0
    %874 = vmatprep.subr.mxu0 0.0
    %875 = vmatpush1.msra.mxu0 %v858
    %876 = vmatprep.subr.mxu0 0.0
    %877 = vmatpush1.msra.mxu0 %v859
    %878 = vmatprep.subr.mxu0 0.0
    %879 = vmatpush1.msra.mxu0 %v860
    %880 = vmatprep.subr.mxu0 0.0
    %881 = vmatpush1.msra.mxu0 %v861
    %882 = vmatprep.subr.mxu0 0.0
    %883 = vmatpush1.msra.mxu0 0.0
    %884 = vmatprep.subr.mxu0 0.0
    %885 = vmatpush1.msra.mxu0 0.0
    %886 = vmatprep.subr.mxu0 0.0
    %887 = vmatpush1.msra.mxu0 0.0
    %888 = vmatprep.subr.mxu0 0.0
    %889 = vmatpush1.msra.mxu0 0.0
    %890 = vmatprep.subr.mxu0 0.0
    %891 = vmatpush1.msra.mxu0 0.0
    %892 = vmatprep.subr.mxu0 0.0
    %893 = vmatpush1.msra.mxu0 0.0
    %894 = vmatprep.subr.mxu0 0.0
    %895 = vmatpush1.msra.mxu0 0.0
    %896 = vmatprep.subr.mxu0 0.0
    %897 = vmatpush1.msra.mxu0 0.0
    %898 = vmatprep.subr.mxu0 0.0
    %899 = vmatpush1.msra.mxu0 0.0
    %900 = vmatprep.subr.mxu0 0.0
    %901 = vmatpush1.msra.mxu0 0.0
    %902 = vmatprep.subr.mxu0 0.0
    %903 = vmatpush1.msra.mxu0 0.0
    %904 = vmatprep.subr.mxu0 0.0
    %905 = vmatpush1.msra.mxu0 0.0
    %906 = vmatprep.subr.mxu0 0.0
    %907 = vmatpush1.msra.mxu0 0.0
    %908 = vmatprep.subr.mxu0 0.0
    %909 = vmatpush1.msra.mxu0 0.0
    %910 = vmatprep.subr.mxu0 0.0
    %911 = vmatpush1.msra.mxu0 0.0
    %912 = vmatprep.subr.mxu0 0.0
    %913 = vmatpush1.msra.mxu0 0.0
    %914 = vmatprep.subr.mxu0 0.0
    %915 = vmatpush1.msra.mxu0 0.0
    %916 = vmatprep.subr.mxu0 0.0
    %917 = vmatpush1.msra.mxu0 0.0
    %918 = vmatprep.subr.mxu0 0.0
    %919 = vmatpush1.msra.mxu0 0.0
    %920 = vmatprep.subr.mxu0 0.0
    %921 = vmatpush1.msra.mxu0 0.0
    %922 = vmatprep.subr.mxu0 0.0
    %923 = vmatpush1.msra.mxu0 0.0
    %924 = vmatprep.subr.mxu0 0.0
    %925 = vmatpush1.msra.mxu0 0.0
    %926 = vmatprep.subr.mxu0 0.0
    %927 = vmatpush1.msra.mxu0 0.0
    %928 = vmatprep.subr.mxu0 0.0
    %929 = vmatpush1.msra.mxu0 0.0
    %930 = vmatprep.subr.mxu0 0.0
    %931 = vmatpush1.msra.mxu0 0.0
    %932 = vmatprep.subr.mxu0 0.0
    %933 = vmatpush1.msra.mxu0 0.0
    %934 = vmatprep.subr.mxu0 0.0
    %935 = vmatpush1.msra.mxu0 0.0
    %936 = vmatprep.subr.mxu0 0.0
    %937 = vmatpush1.msra.mxu0 0.0
    %938 = vmatprep.mubr.f32.mxu0 0.0
    %939 = vmatmul.mubr.f32.gmra.mrb[0].mxu0 %v863
    %v940 = vpop.f32.mrb[0].mxu0
    %v941 = vadd.f32 0.0, %v940
    %v942 = vpop.f32.mrb[0].mxu0
    %943 = vmatprep.mubr.f32.mxu0 0.0
    %944 = vmatmul.mubr.f32.gmra.mrb[0].mxu0 %v866
    %v945 = vpop.f32.mrb[0].mxu0
    %v946 = vadd.f32 0.0, %v945
    %v947 = vpop.f32.mrb[0].mxu0
    %948 = vmatprep.mubr.f32.mxu0 0.0
    %949 = vmatmul.mubr.f32.gmra.mrb[0].mxu0 %v869
    %v950 = vpop.f32.mrb[0].mxu0
    %v951 = vadd.f32 0.0, %v950
    %v952 = vpop.f32.mrb[0].mxu0
    %953 = vmatprep.mubr.f32.mxu0 0.0
    %954 = vmatmul.mubr.f32.gmra.mrb[0].mxu0 %v872
    %v955 = vpop.f32.mrb[0].mxu0
    %v956 = vadd.f32 0.0, %v955
    %v957 = vpop.f32.mrb[0].mxu0
    %958 = vdwg.mxu0
    %v959 = vld [vmem:[%s8] sm:$0x1]
    %v961 = vlaneseq
    %v962 = vshrl.u32 %v961, 7
    %v963 = vsub.s32 0, %v962
    %v964 = vrot.slane %v959, %v963
    %v966 = vadd.f32 %v941, %v964
    %v967 = vadd.f32 %v946, %v964
    %v968 = vadd.f32 %v951, %v964
    %v969 = vadd.f32 %v956, %v964
    %970 = vxpose.xlu0.b32.start [1/16] %v966, 128
    %971 = vxpose.xlu0.b32.cont [2/16] %v967, 128
    %972 = vxpose.xlu0.b32.cont [3/16] 0.0, 128
    %973 = vxpose.xlu0.b32.cont [4/16] 0.0, 128
    %974 = vxpose.xlu0.b32.cont [5/16] 0.0, 128
    %975 = vxpose.xlu0.b32.cont [6/16] 0.0, 128
    %976 = vxpose.xlu0.b32.cont [7/16] 0.0, 128
    %977 = vxpose.xlu0.b32.cont [8/16] 0.0, 128
    %978 = vxpose.xlu0.b32.cont [9/16] 0.0, 128
    %979 = vxpose.xlu0.b32.cont [10/16] 0.0, 128
    %980 = vxpose.xlu0.b32.cont [11/16] 0.0, 128
    %981 = vxpose.xlu0.b32.cont [12/16] 0.0, 128
    %982 = vxpose.xlu0.b32.cont [13/16] 0.0, 128
    %983 = vxpose.xlu0.b32.cont [14/16] 0.0, 128
    %984 = vxpose.xlu0.b32.cont [15/16] 0.0, 128
    %985 = vxpose.xlu0.b32.end [16/16] 0.0, 128
    %v986 = vpop.trf.xlu0
    %v987 = vpop.trf.xlu0
    %v988 = vpop.trf.xlu0
    %v989 = vpop.trf.xlu0
    %v990 = vpop.trf.xlu0
    %v991 = vpop.trf.xlu0
    %v992 = vpop.trf.xlu0
    %v993 = vpop.trf.xlu0
    %v994 = vpop.trf.xlu0
    %v995 = vpop.trf.xlu0
    %v996 = vpop.trf.xlu0
    %v997 = vpop.trf.xlu0
    %v998 = vpop.trf.xlu0
    %v999 = vpop.trf.xlu0
    %v1000 = vpop.trf.xlu0
    %v1001 = vpop.trf.xlu0
    %1002 = vxpose.xlu0.b32.start [1/16] %v968, 128
    %1003 = vxpose.xlu0.b32.cont [2/16] %v969, 128
    %1004 = vxpose.xlu0.b32.cont [3/16] 0.0, 128
    %1005 = vxpose.xlu0.b32.cont [4/16] 0.0, 128
    %1006 = vxpose.xlu0.b32.cont [5/16] 0.0, 128
    %1007 = vxpose.xlu0.b32.cont [6/16] 0.0, 128
    %1008 = vxpose.xlu0.b32.cont [7/16] 0.0, 128
    %1009 = vxpose.xlu0.b32.cont [8/16] 0.0, 128
    %1010 = vxpose.xlu0.b32.cont [9/16] 0.0, 128
    %1011 = vxpose.xlu0.b32.cont [10/16] 0.0, 128
    %1012 = vxpose.xlu0.b32.cont [11/16] 0.0, 128
    %1013 = vxpose.xlu0.b32.cont [12/16] 0.0, 128
    %1014 = vxpose.xlu0.b32.cont [13/16] 0.0, 128
    %1015 = vxpose.xlu0.b32.cont [14/16] 0.0, 128
    %1016 = vxpose.xlu0.b32.cont [15/16] 0.0, 128
    %1017 = vxpose.xlu0.b32.end [16/16] 0.0, 128
    %v1018 = vpop.trf.xlu0
    %v1019 = vpop.trf.xlu0
    %v1020 = vpop.trf.xlu0
    %v1021 = vpop.trf.xlu0
    %v1022 = vpop.trf.xlu0
    %v1023 = vpop.trf.xlu0
    %v1024 = vpop.trf.xlu0
    %v1025 = vpop.trf.xlu0
    %v1026 = vpop.trf.xlu0
    %v1027 = vpop.trf.xlu0
    %v1028 = vpop.trf.xlu0
    %v1029 = vpop.trf.xlu0
    %v1030 = vpop.trf.xlu0
    %v1031 = vpop.trf.xlu0
    %v1032 = vpop.trf.xlu0
    %v1033 = vpop.trf.xlu0
    %vm1034 = vcmask 130048
    %1035 = vst.msk [vmem:[#allocation2] sm:$0xff] %vm1034, %v986
    %1036 = vst.msk [vmem:[#allocation2 + $0x8] sm:$0xff] %vm1034, %v1018
    // Predicated region
    $region38: #{tpu_custom_call.1} parent=1 // pred_check
      _
    $region39: #{tpu_custom_call.1} parent=1 // pred_check_branch
      %1038 = sbr.rel (0) target = $region41
    $region40: #{tpu_custom_call.1} parent=1 // pred_region
      %s1040 = ssub.s32 256, 256
      %1041 = vsyncadd [#allocation3], %s1040
      %s1042 = sshll.u32 [#allocation2], 4
      %s1043 = int_to_ptr.vmem [resolvable:$true] %s1042
      %1048 = dma.vmem_to_hbm [thread:$0]  %s1043, 256, %s9, [#allocation3], 128, 128, 8
    $region41: #{tpu_custom_call.1} parent=1 // pred_fallthru
      _
    // Predicated region
    $region42: #{tpu_custom_call.1} parent=1 // pred_check
      _
    $region43: #{tpu_custom_call.1} parent=1 // pred_check_branch
      %1050 = sbr.rel (0) target = $region45
    $region44: #{tpu_custom_call.1} parent=1 // pred_region
      %1051 = dma.done [#allocation3], 256
    $region45: #{tpu_custom_call.1} parent=1 // pred_fallthru
      _
    %1052 = vsyncpa [#allocation3], 1

</llo_original>
